<compile_context>
chip_gen: v7x
topology: tpu7x:2x2x1
jax: 0.10.0
libtpu: 0.0.40
codegen_flags: <defaults>
</compile_context>

<pallas_src>
import functools

import jax
import jax.numpy as jnp
from jax.experimental import pallas as pl
from jax.experimental.pallas import tpu as pltpu

K_IN = 28 * 28     # 784
HID = 256
N_OUT = 10
N_PAD = 128        # lane-dense padded output width (do NOT widen; fc2 is <7% of FLOPs)
DD_STEPS = 4


def _round_up(a, m):
    return ((a + m - 1) // m) * m


def densedd_kernel(x_ref, w0_ref, wd_ref, w2_ref, o_ref, *, n_sub):
    # Tiles:
    #   x_ref : (TM, 784) f32    w0_ref: (784, 256) bf16
    #   wd_ref: (256, 256) bf16  w2_ref: (256, 128) bf16 (zero-padded cols)
    #   o_ref : (TM, 128) bf16
    w0 = w0_ref[...]
    wd = wd_ref[...]
    w2 = w2_ref[...]

    tm = x_ref.shape[0]
    sub = tm // n_sub

    # fc0 per sub-tile: cast f32 -> bf16 in-kernel, accumulate in f32 on MXU.
    cs, hs = [], []
    for s in range(n_sub):
        x_s = x_ref[pl.ds(s * sub, sub), :].astype(jnp.bfloat16)
        c = jnp.dot(x_s, w0, preferred_element_type=jnp.float32)
        cs.append(c)
        hs.append(c)

    # 4 shared-weight dd steps.  Sub-tile chains are independent, so listing
    # both matmuls before both elementwise epilogues lets the scheduler
    # overlap MXU drain of one chain with VPU work of the other.
    for _ in range(DD_STEPS):
        gs = [jnp.dot(hs[s].astype(jnp.bfloat16), wd,
                      preferred_element_type=jnp.float32)
              for s in range(n_sub)]
        hs = [gs[s] * cs[s] + cs[s] for s in range(n_sub)]

    # fc2 into the 128-lane zero-padded output -> unmasked lane-dense stores.
    for s in range(n_sub):
        out_s = jnp.dot(hs[s].astype(jnp.bfloat16), w2,
                        preferred_element_type=jnp.float32)
        o_ref[pl.ds(s * sub, sub), :] = out_s.astype(o_ref.dtype)


def prepare_weights(w0, wd, w2):
    """One-time weight prep (call once, outside the per-step jit).

    Weights are in (in, out) layout, i.e. the transpose of nn.Linear.weight.
    """
    w0p = w0.astype(jnp.bfloat16)                                    # (784, 256)
    wdp = wd.astype(jnp.bfloat16)                                    # (256, 256)
    w2p = jnp.zeros((HID, N_PAD), jnp.bfloat16).at[:, :N_OUT].set(
        w2.astype(jnp.bfloat16))                                     # (256, 128)
    return w0p, wdp, w2p


@functools.partial(jax.jit, static_argnames=("tm",))
def densedd_forward(x, w0p, wdp, w2p, *, tm=1024):
    """x: (B, 784) f32; w0p/wdp/w2p from prepare_weights(). Returns (B, 10) f32."""
    B = x.shape[0]

    # Tile selection: shrink for small batches; when the batch is big enough
    # to matter, prefer >=2 grid steps so v7x's second TensorCore is used.
    tm_eff = min(tm, _round_up(B, 8))
    if B > 2 * N_PAD and B <= tm_eff:
        tm_eff = _round_up((B + 1) // 2, 8)
    bp = _round_up(B, tm_eff)
    xin = x if bp == B else jnp.pad(x, ((0, bp - B), (0, 0)))  # skip copy when exact
    grid = (bp // tm_eff,)

    # Split the tile into 2 independent dd chains when it is big enough.
    n_sub = 2 if tm_eff >= 256 else 1

    flops = 2 * bp * (K_IN * HID + DD_STEPS * HID * HID + HID * N_PAD)
    bytes_accessed = (xin.size * 4 + w0p.size * 2 + wdp.size * 2
                      + w2p.size * 2 + bp * N_PAD * 2)

    out_padded = pl.pallas_call(
        functools.partial(densedd_kernel, n_sub=n_sub),
        out_shape=jax.ShapeDtypeStruct((bp, N_PAD), jnp.bfloat16),
        grid=grid,
        in_specs=[
            pl.BlockSpec((tm_eff, K_IN), lambda i: (i, 0)),   # x: batch-tiled, full K
            pl.BlockSpec((K_IN, HID), lambda i: (0, 0)),      # w0: VMEM-resident
            pl.BlockSpec((HID, HID), lambda i: (0, 0)),       # wd: VMEM-resident
            pl.BlockSpec((HID, N_PAD), lambda i: (0, 0)),     # w2: VMEM-resident
        ],
        out_specs=pl.BlockSpec((tm_eff, N_PAD), lambda i: (i, 0)),
        compiler_params=pltpu.CompilerParams(
            dimension_semantics=("parallel",),     # shards batch across v7x's 2 TCs
            vmem_limit_bytes=64 * 1024 * 1024),    # headroom for large tm (v5e default=16MiB)
        cost_estimate=pl.CostEstimate(
            flops=flops, transcendentals=0, bytes_accessed=bytes_accessed),
    )(xin, w0p, wdp, w2p)

    return out_padded[:B, :N_OUT].astype(jnp.float32)


def reference_forward(x, w0, wd, w2):
    c = x @ w0
    h = c
    for _ in range(DD_STEPS):
        g = h @ wd
        h = g * c + c
    return h @ w2


if __name__ == "__main__":
    key = jax.random.PRNGKey(0)
    kx, k0, kd, k2 = jax.random.split(key, 4)

    B = 8
    x = jax.random.normal(kx, (B, K_IN), dtype=jnp.float32)
    # nn.Linear-style init scales; weights stored transposed as (in, out).
    w0 = jax.random.uniform(k0, (K_IN, HID), jnp.float32, -1.0, 1.0) / jnp.sqrt(K_IN)
    wd = jax.random.uniform(kd, (HID, HID), jnp.float32, -1.0, 1.0) / jnp.sqrt(HID)
    w2 = jax.random.uniform(k2, (HID, N_OUT), jnp.float32, -1.0, 1.0) / jnp.sqrt(HID)

    # One-time weight cast/pad, hoisted out of the per-call jit.
    w0p, wdp, w2p = prepare_weights(w0, wd, w2)
    w0p, wdp, w2p = jax.block_until_ready((w0p, wdp, w2p))

    out = densedd_forward(x, w0p, wdp, w2p)   # small batch -> tile auto-shrinks
    out = jax.block_until_ready(out)

    ref = reference_forward(x, w0, wd, w2)
    assert out.shape == (B, N_OUT)
    # bf16 MXU operands + bf16 output vs pure-f32 reference -> loose tolerance.
    assert jnp.allclose(out, ref, rtol=7e-2, atol=7e-2), (
        "mismatch vs JAX reference: max abs err "
        f"{float(jnp.max(jnp.abs(out - ref))):.4f}")

    print("KERNEL_OK")
</pallas_src>

<mosaic_0001>
module attributes {stable_mosaic.version = 11 : i64} {
  func.func @densedd_kernel(%arg0: i32, %arg1: memref<8x784xf32, #tpu.memory_space<vmem>>, %arg2: memref<784x256xbf16, #tpu.memory_space<vmem>>, %arg3: memref<256x256xbf16, #tpu.memory_space<vmem>>, %arg4: memref<256x128xbf16, #tpu.memory_space<vmem>>, %arg5: memref<8x128xbf16, #tpu.memory_space<vmem>>) attributes {dimension_semantics = [#tpu.dimension_semantics<parallel>], iteration_bounds = array<i64: 1>, scalar_prefetch = 0 : i64, scratch_operands = 0 : i64, tpu.core_type = #tpu.core_type<tc>, window_params = [{transform_indices = @transform_0, window_bounds = array<i64: 8, 784>}, {pipeline_mode = #tpu.pipeline_mode<synchronous>, transform_indices = @transform_1, window_bounds = array<i64: 784, 256>}, {pipeline_mode = #tpu.pipeline_mode<synchronous>, transform_indices = @transform_2, window_bounds = array<i64: 256, 256>}, {pipeline_mode = #tpu.pipeline_mode<synchronous>, transform_indices = @transform_3, window_bounds = array<i64: 256, 128>}, {transform_indices = @transform_4, window_bounds = array<i64: 8, 128>}]} {
    %c0 = arith.constant 0 : index
    %c0_0 = arith.constant 0 : index
    %0 = vector.load %arg2[%c0, %c0_0] : memref<784x256xbf16, #tpu.memory_space<vmem>>, vector<784x256xbf16>
    %c0_1 = arith.constant 0 : index
    %c0_2 = arith.constant 0 : index
    %1 = vector.load %arg3[%c0_1, %c0_2] : memref<256x256xbf16, #tpu.memory_space<vmem>>, vector<256x256xbf16>
    %c0_3 = arith.constant 0 : index
    %c0_4 = arith.constant 0 : index
    %2 = vector.load %arg4[%c0_3, %c0_4] : memref<256x128xbf16, #tpu.memory_space<vmem>>, vector<256x128xbf16>
    %c0_5 = arith.constant 0 : index
    %c0_6 = arith.constant 0 : index
    %3 = vector.load %arg1[%c0_5, %c0_6] : memref<8x784xf32, #tpu.memory_space<vmem>>, vector<8x784xf32>
    %4 = arith.truncf %3 : vector<8x784xf32> to vector<8x784xbf16>
    %cst = arith.constant dense<0.000000e+00> : vector<8x256xf32>
    %5 = tpu.matmul %4, %0, %cst {dimension_numbers = #tpu.dot_dimension_numbers<[1], [0], [0], [1], [0, 0, 1, 1], [], []>} : vector<8x784xbf16>, vector<784x256xbf16>, vector<8x256xf32> -> vector<8x256xf32>
    %6 = arith.truncf %5 : vector<8x256xf32> to vector<8x256xbf16>
    %cst_7 = arith.constant dense<0.000000e+00> : vector<8x256xf32>
    %7 = tpu.matmul %6, %1, %cst_7 {dimension_numbers = #tpu.dot_dimension_numbers<[1], [0], [0], [1], [0, 0, 1, 1], [], []>} : vector<8x256xbf16>, vector<256x256xbf16>, vector<8x256xf32> -> vector<8x256xf32>
    %8 = arith.mulf %7, %5 : vector<8x256xf32>
    %9 = arith.addf %8, %5 : vector<8x256xf32>
    %10 = arith.truncf %9 : vector<8x256xf32> to vector<8x256xbf16>
    %cst_8 = arith.constant dense<0.000000e+00> : vector<8x256xf32>
    %11 = tpu.matmul %10, %1, %cst_8 {dimension_numbers = #tpu.dot_dimension_numbers<[1], [0], [0], [1], [0, 0, 1, 1], [], []>} : vector<8x256xbf16>, vector<256x256xbf16>, vector<8x256xf32> -> vector<8x256xf32>
    %12 = arith.mulf %11, %5 : vector<8x256xf32>
    %13 = arith.addf %12, %5 : vector<8x256xf32>
    %14 = arith.truncf %13 : vector<8x256xf32> to vector<8x256xbf16>
    %cst_9 = arith.constant dense<0.000000e+00> : vector<8x256xf32>
    %15 = tpu.matmul %14, %1, %cst_9 {dimension_numbers = #tpu.dot_dimension_numbers<[1], [0], [0], [1], [0, 0, 1, 1], [], []>} : vector<8x256xbf16>, vector<256x256xbf16>, vector<8x256xf32> -> vector<8x256xf32>
    %16 = arith.mulf %15, %5 : vector<8x256xf32>
    %17 = arith.addf %16, %5 : vector<8x256xf32>
    %18 = arith.truncf %17 : vector<8x256xf32> to vector<8x256xbf16>
    %cst_10 = arith.constant dense<0.000000e+00> : vector<8x256xf32>
    %19 = tpu.matmul %18, %1, %cst_10 {dimension_numbers = #tpu.dot_dimension_numbers<[1], [0], [0], [1], [0, 0, 1, 1], [], []>} : vector<8x256xbf16>, vector<256x256xbf16>, vector<8x256xf32> -> vector<8x256xf32>
    %20 = arith.mulf %19, %5 : vector<8x256xf32>
    %21 = arith.addf %20, %5 : vector<8x256xf32>
    %22 = arith.truncf %21 : vector<8x256xf32> to vector<8x256xbf16>
    %cst_11 = arith.constant dense<0.000000e+00> : vector<8x128xf32>
    %23 = tpu.matmul %22, %2, %cst_11 {dimension_numbers = #tpu.dot_dimension_numbers<[1], [0], [0], [1], [0, 0, 1, 1], [], []>} : vector<8x256xbf16>, vector<256x128xbf16>, vector<8x128xf32> -> vector<8x128xf32>
    %24 = arith.truncf %23 : vector<8x128xf32> to vector<8x128xbf16>
    %c0_12 = arith.constant 0 : index
    %c0_13 = arith.constant 0 : index
    %25 = vector.load %arg5[%c0_12, %c0_13] : memref<8x128xbf16, #tpu.memory_space<vmem>>, vector<8x128xbf16>
    tpu.vector_store %arg5[%c0_12, %c0_13], %24 {strides = array<i32>} : memref<8x128xbf16, #tpu.memory_space<vmem>>, vector<8x128xbf16>,
    return
  }
  func.func @transform_0(%arg0: i32) -> (i32, i32) {
    %c0_i32 = arith.constant 0 : i32
    %c0_i32_0 = arith.constant 0 : i32
    return %arg0, %c0_i32 : i32, i32
  }
  func.func @transform_1(%arg0: i32) -> (i32, i32) {
    %c0_i32 = arith.constant 0 : i32
    %c0_i32_0 = arith.constant 0 : i32
    %c0_i32_1 = arith.constant 0 : i32
    return %c0_i32, %c0_i32_0 : i32, i32
  }
  func.func @transform_2(%arg0: i32) -> (i32, i32) {
    %c0_i32 = arith.constant 0 : i32
    %c0_i32_0 = arith.constant 0 : i32
    %c0_i32_1 = arith.constant 0 : i32
    return %c0_i32, %c0_i32_0 : i32, i32
  }
  func.func @transform_3(%arg0: i32) -> (i32, i32) {
    %c0_i32 = arith.constant 0 : i32
    %c0_i32_0 = arith.constant 0 : i32
    %c0_i32_1 = arith.constant 0 : i32
    return %c0_i32, %c0_i32_0 : i32, i32
  }
  func.func @transform_4(%arg0: i32) -> (i32, i32) {
    %c0_i32 = arith.constant 0 : i32
    %c0_i32_0 = arith.constant 0 : i32
    return %arg0, %c0_i32 : i32, i32
  }
}

</mosaic_0001>

<llo_original>
// kernel: densedd_forward.1
$region0: #{densedd_forward.1}
  #allocation0 [shape = 'u32[]', space=smem, size = 0x4, offset = 0x4, fixed_abs, tag = 'smem constant byte address 0x4 - core index']
  #allocation1 [shape = 'u32[144,128]{1,0:T(1,128)}', space=vmem, size = 0x12000, scoped, tag = 'internal scratch']
  %s0 = inlined_call_operand.hbm [shape: f32[8,784], index: 0, kind: input, shape index: {}]
  %s1 = inlined_call_operand.hbm [shape: bf16[784,256], index: 1, kind: input, shape index: {}]
  %s2 = inlined_call_operand.hbm [shape: bf16[256,256], index: 2, kind: input, shape index: {}]
  %s3 = inlined_call_operand.hbm [shape: bf16[256,128], index: 3, kind: input, shape index: {}]
  %s4 = inlined_call_operand.hbm [shape: bf16[8,128], index: 4, kind: output, shape index: {}]
  %s5 = sld [smem:[#allocation0]]
  $region42: #{densedd_forward.1} parent=0
    _
  %s7 = ssub.s32 1, %s5
  %s8 = scalar_select 0, %s7, %s5
  $region1: #{densedd_forward.1} parent=0
    #allocation2 [shape = 'u8[28672]{0}', space=vmem, size = 0x7000, scoped, tag = 'input window, operand 0, single buffered']
    #allocation3 [shape = 's32[1]{0}', space=sflag, size = 0x4, scoped, tag = 'scoped memory for densedd_forward.1']
    #allocation4 [shape = 's32[1]{0}', space=sflag, size = 0x4, scoped, tag = 'scoped memory for densedd_forward.1']
    #allocation5 [shape = 'u8[401408]{0}', space=vmem, size = 0x62000, scoped, tag = 'input window, operand 1, single buffered']
    #allocation6 [shape = 's32[1]{0}', space=sflag, size = 0x4, scoped, tag = 'scoped memory for densedd_forward.1']
    #allocation7 [shape = 'u8[131072]{0}', space=vmem, size = 0x20000, scoped, tag = 'input window, operand 2, single buffered']
    #allocation8 [shape = 'u8[65536]{0}', space=vmem, size = 0x10000, scoped, tag = 'input window, operand 3, single buffered']
    #allocation9 [shape = 's32[1]{0}', space=sflag, size = 0x4, scoped, tag = 'scoped memory for densedd_forward.1']
    #allocation10 [shape = 'u8[2048]{0}', space=vmem, size = 0x800, scoped, tag = 'output window, operand 0, single buffered']
    %9 = vsyncpa [#allocation3], 0
    %10 = vsyncpa [#allocation6], 0
    %11 = vsyncpa [#allocation9], 0
    %12 = vsyncpa [#allocation4], 0
    // Predicated region
    $region2: #{densedd_forward.1} parent=1 // pred_check
      _
    $region3: #{densedd_forward.1} parent=1 // pred_check_branch
      %14 = sbr.rel (0) target = $region5
    $region4: #{densedd_forward.1} parent=1 // pred_region
      %s16 = ssub.s32 896, 896
      %17 = vsyncadd [#allocation3], %s16
      %s19 = sshll.u32 [#allocation2], 4
      %s20 = int_to_ptr.vmem [resolvable:$true] %s19
      %22 = dma.hbm_to_vmem [thread:$0]  %s0, 896, %s20, [#allocation3]
    $region5: #{densedd_forward.1} parent=1 // pred_fallthru
      _
    // Predicated region
    $region6: #{densedd_forward.1} parent=1 // pred_check
      _
    $region7: #{densedd_forward.1} parent=1 // pred_check_branch
      %24 = sbr.rel (0) target = $region9
    $region8: #{densedd_forward.1} parent=1 // pred_region
      %s26 = ssub.s32 12544, 12544
      %27 = vsyncadd [#allocation6], %s26
      %s28 = sshll.u32 [#allocation5], 4
      %s29 = int_to_ptr.vmem [resolvable:$true] %s28
      %34 = dma.hbm_to_vmem [thread:$0]  %s1, 12544, %s29, [#allocation6], 128, 128, 8
    $region9: #{densedd_forward.1} parent=1 // pred_fallthru
      _
    // Predicated region
    $region10: #{densedd_forward.1} parent=1 // pred_check
      _
    $region11: #{densedd_forward.1} parent=1 // pred_check_branch
      %36 = sbr.rel (0) target = $region13
    $region12: #{densedd_forward.1} parent=1 // pred_region
      %s38 = ssub.s32 4096, 4096
      %39 = vsyncadd [#allocation6], %s38
      %s40 = sshll.u32 [#allocation7], 4
      %s41 = int_to_ptr.vmem [resolvable:$true] %s40
      %46 = dma.hbm_to_vmem [thread:$0]  %s2, 4096, %s41, [#allocation6], 128, 128, 8
    $region13: #{densedd_forward.1} parent=1 // pred_fallthru
      _
    // Predicated region
    $region14: #{densedd_forward.1} parent=1 // pred_check
      _
    $region15: #{densedd_forward.1} parent=1 // pred_check_branch
      %48 = sbr.rel (0) target = $region17
    $region16: #{densedd_forward.1} parent=1 // pred_region
      %s50 = ssub.s32 2048, 2048
      %51 = vsyncadd [#allocation9], %s50
      %s52 = sshll.u32 [#allocation8], 4
      %s53 = int_to_ptr.vmem [resolvable:$true] %s52
      %58 = dma.hbm_to_vmem [thread:$0]  %s3, 2048, %s53, [#allocation9], 64, 64, 4
    $region17: #{densedd_forward.1} parent=1 // pred_fallthru
      _
    // Predicated region
    $region18: #{densedd_forward.1} parent=1 // pred_check
      _
    $region19: #{densedd_forward.1} parent=1 // pred_check_branch
      %60 = sbr.rel (0) target = $region21
    $region20: #{densedd_forward.1} parent=1 // pred_region
      %61 = dma.done [#allocation3], 896
    $region21: #{densedd_forward.1} parent=1 // pred_fallthru
      _
    // Predicated region
    $region22: #{densedd_forward.1} parent=1 // pred_check
      _
    $region23: #{densedd_forward.1} parent=1 // pred_check_branch
      %63 = sbr.rel (0) target = $region25
    $region24: #{densedd_forward.1} parent=1 // pred_region
      %64 = dma.done [#allocation6], 12544
    $region25: #{densedd_forward.1} parent=1 // pred_fallthru
      _
    // Predicated region
    $region26: #{densedd_forward.1} parent=1 // pred_check
      _
    $region27: #{densedd_forward.1} parent=1 // pred_check_branch
      %66 = sbr.rel (0) target = $region29
    $region28: #{densedd_forward.1} parent=1 // pred_region
      %67 = dma.done [#allocation6], 4096
    $region29: #{densedd_forward.1} parent=1 // pred_fallthru
      _
    // Predicated region
    $region30: #{densedd_forward.1} parent=1 // pred_check
      _
    $region31: #{densedd_forward.1} parent=1 // pred_check_branch
      %69 = sbr.rel (0) target = $region33
    $region32: #{densedd_forward.1} parent=1 // pred_region
      %70 = dma.done [#allocation9], 2048
    $region33: #{densedd_forward.1} parent=1 // pred_fallthru
      _
    %v72 = vld [vmem:[#allocation5] sm:$0xff]
    %v73 = vld [vmem:[#allocation5 + $0x8] sm:$0xff]
    %v74 = vld [vmem:[#allocation5 + $0x10] sm:$0xff]
    %v75 = vld [vmem:[#allocation5 + $0x18] sm:$0xff]
    %v76 = vld [vmem:[#allocation5 + $0x20] sm:$0xff]
    %v77 = vld [vmem:[#allocation5 + $0x28] sm:$0xff]
    %v78 = vld [vmem:[#allocation5 + $0x30] sm:$0xff]
    %v79 = vld [vmem:[#allocation5 + $0x38] sm:$0xff]
    %v80 = vld [vmem:[#allocation5 + $0x40] sm:$0xff]
    %v81 = vld [vmem:[#allocation5 + $0x48] sm:$0xff]
    %v82 = vld [vmem:[#allocation5 + $0x50] sm:$0xff]
    %v83 = vld [vmem:[#allocation5 + $0x58] sm:$0xff]
    %v84 = vld [vmem:[#allocation5 + $0x60] sm:$0xff]
    %v85 = vld [vmem:[#allocation5 + $0x68] sm:$0xff]
    %v86 = vld [vmem:[#allocation5 + $0x70] sm:$0xff]
    %v87 = vld [vmem:[#allocation5 + $0x78] sm:$0xff]
    %v88 = vld [vmem:[#allocation5 + $0x80] sm:$0xff]
    %v89 = vld [vmem:[#allocation5 + $0x88] sm:$0xff]
    %v90 = vld [vmem:[#allocation5 + $0x90] sm:$0xff]
    %v91 = vld [vmem:[#allocation5 + $0x98] sm:$0xff]
    %v92 = vld [vmem:[#allocation5 + $0xa0] sm:$0xff]
    %v93 = vld [vmem:[#allocation5 + $0xa8] sm:$0xff]
    %v94 = vld [vmem:[#allocation5 + $0xb0] sm:$0xff]
    %v95 = vld [vmem:[#allocation5 + $0xb8] sm:$0xff]
    %v96 = vld [vmem:[#allocation5 + $0xc0] sm:$0xff]
    %v97 = vld [vmem:[#allocation5 + $0xc8] sm:$0xff]
    %v98 = vld [vmem:[#allocation5 + $0xd0] sm:$0xff]
    %v99 = vld [vmem:[#allocation5 + $0xd8] sm:$0xff]
    %v100 = vld [vmem:[#allocation5 + $0xe0] sm:$0xff]
    %v101 = vld [vmem:[#allocation5 + $0xe8] sm:$0xff]
    %v102 = vld [vmem:[#allocation5 + $0xf0] sm:$0xff]
    %v103 = vld [vmem:[#allocation5 + $0xf8] sm:$0xff]
    %v104 = vld [vmem:[#allocation5 + $0x100] sm:$0xff]
    %v105 = vld [vmem:[#allocation5 + $0x108] sm:$0xff]
    %v106 = vld [vmem:[#allocation5 + $0x110] sm:$0xff]
    %v107 = vld [vmem:[#allocation5 + $0x118] sm:$0xff]
    %v108 = vld [vmem:[#allocation5 + $0x120] sm:$0xff]
    %v109 = vld [vmem:[#allocation5 + $0x128] sm:$0xff]
    %v110 = vld [vmem:[#allocation5 + $0x130] sm:$0xff]
    %v111 = vld [vmem:[#allocation5 + $0x138] sm:$0xff]
    %v112 = vld [vmem:[#allocation5 + $0x140] sm:$0xff]
    %v113 = vld [vmem:[#allocation5 + $0x148] sm:$0xff]
    %v114 = vld [vmem:[#allocation5 + $0x150] sm:$0xff]
    %v115 = vld [vmem:[#allocation5 + $0x158] sm:$0xff]
    %v116 = vld [vmem:[#allocation5 + $0x160] sm:$0xff]
    %v117 = vld [vmem:[#allocation5 + $0x168] sm:$0xff]
    %v118 = vld [vmem:[#allocation5 + $0x170] sm:$0xff]
    %v119 = vld [vmem:[#allocation5 + $0x178] sm:$0xff]
    %v120 = vld [vmem:[#allocation5 + $0x180] sm:$0xff]
    %v121 = vld [vmem:[#allocation5 + $0x188] sm:$0xff]
    %v122 = vld [vmem:[#allocation5 + $0x190] sm:$0xff]
    %v123 = vld [vmem:[#allocation5 + $0x198] sm:$0xff]
    %v124 = vld [vmem:[#allocation5 + $0x1a0] sm:$0xff]
    %v125 = vld [vmem:[#allocation5 + $0x1a8] sm:$0xff]
    %v126 = vld [vmem:[#allocation5 + $0x1b0] sm:$0xff]
    %v127 = vld [vmem:[#allocation5 + $0x1b8] sm:$0xff]
    %v128 = vld [vmem:[#allocation5 + $0x1c0] sm:$0xff]
    %v129 = vld [vmem:[#allocation5 + $0x1c8] sm:$0xff]
    %v130 = vld [vmem:[#allocation5 + $0x1d0] sm:$0xff]
    %v131 = vld [vmem:[#allocation5 + $0x1d8] sm:$0xff]
    %v132 = vld [vmem:[#allocation5 + $0x1e0] sm:$0xff]
    %v133 = vld [vmem:[#allocation5 + $0x1e8] sm:$0xff]
    %v134 = vld [vmem:[#allocation5 + $0x1f0] sm:$0xff]
    %v135 = vld [vmem:[#allocation5 + $0x1f8] sm:$0xff]
    %v136 = vld [vmem:[#allocation5 + $0x200] sm:$0xff]
    %v137 = vld [vmem:[#allocation5 + $0x208] sm:$0xff]
    %v138 = vld [vmem:[#allocation5 + $0x210] sm:$0xff]
    %v139 = vld [vmem:[#allocation5 + $0x218] sm:$0xff]
    %v140 = vld [vmem:[#allocation5 + $0x220] sm:$0xff]
    %v141 = vld [vmem:[#allocation5 + $0x228] sm:$0xff]
    %v142 = vld [vmem:[#allocation5 + $0x230] sm:$0xff]
    %v143 = vld [vmem:[#allocation5 + $0x238] sm:$0xff]
    %v144 = vld [vmem:[#allocation5 + $0x240] sm:$0xff]
    %v145 = vld [vmem:[#allocation5 + $0x248] sm:$0xff]
    %v146 = vld [vmem:[#allocation5 + $0x250] sm:$0xff]
    %v147 = vld [vmem:[#allocation5 + $0x258] sm:$0xff]
    %v148 = vld [vmem:[#allocation5 + $0x260] sm:$0xff]
    %v149 = vld [vmem:[#allocation5 + $0x268] sm:$0xff]
    %v150 = vld [vmem:[#allocation5 + $0x270] sm:$0xff]
    %v151 = vld [vmem:[#allocation5 + $0x278] sm:$0xff]
    %v152 = vld [vmem:[#allocation5 + $0x280] sm:$0xff]
    %v153 = vld [vmem:[#allocation5 + $0x288] sm:$0xff]
    %v154 = vld [vmem:[#allocation5 + $0x290] sm:$0xff]
    %v155 = vld [vmem:[#allocation5 + $0x298] sm:$0xff]
    %v156 = vld [vmem:[#allocation5 + $0x2a0] sm:$0xff]
    %v157 = vld [vmem:[#allocation5 + $0x2a8] sm:$0xff]
    %v158 = vld [vmem:[#allocation5 + $0x2b0] sm:$0xff]
    %v159 = vld [vmem:[#allocation5 + $0x2b8] sm:$0xff]
    %v160 = vld [vmem:[#allocation5 + $0x2c0] sm:$0xff]
    %v161 = vld [vmem:[#allocation5 + $0x2c8] sm:$0xff]
    %v162 = vld [vmem:[#allocation5 + $0x2d0] sm:$0xff]
    %v163 = vld [vmem:[#allocation5 + $0x2d8] sm:$0xff]
    %v164 = vld [vmem:[#allocation5 + $0x2e0] sm:$0xff]
    %v165 = vld [vmem:[#allocation5 + $0x2e8] sm:$0xff]
    %v166 = vld [vmem:[#allocation5 + $0x2f0] sm:$0xff]
    %v167 = vld [vmem:[#allocation5 + $0x2f8] sm:$0xff]
    %v168 = vld [vmem:[#allocation5 + $0x300] sm:$0xff]
    %v169 = vld [vmem:[#allocation5 + $0x308] sm:$0xff]
    %v170 = vld [vmem:[#allocation7] sm:$0xff]
    %v171 = vld [vmem:[#allocation7 + $0x8] sm:$0xff]
    %v172 = vld [vmem:[#allocation7 + $0x10] sm:$0xff]
    %v173 = vld [vmem:[#allocation7 + $0x18] sm:$0xff]
    %v174 = vld [vmem:[#allocation7 + $0x20] sm:$0xff]
    %v175 = vld [vmem:[#allocation7 + $0x28] sm:$0xff]
    %v176 = vld [vmem:[#allocation7 + $0x30] sm:$0xff]
    %v177 = vld [vmem:[#allocation7 + $0x38] sm:$0xff]
    %v178 = vld [vmem:[#allocation7 + $0x40] sm:$0xff]
    %v179 = vld [vmem:[#allocation7 + $0x48] sm:$0xff]
    %v180 = vld [vmem:[#allocation7 + $0x50] sm:$0xff]
    %v181 = vld [vmem:[#allocation7 + $0x58] sm:$0xff]
    %v182 = vld [vmem:[#allocation7 + $0x60] sm:$0xff]
    %v183 = vld [vmem:[#allocation7 + $0x68] sm:$0xff]
    %v184 = vld [vmem:[#allocation7 + $0x70] sm:$0xff]
    %v185 = vld [vmem:[#allocation7 + $0x78] sm:$0xff]
    %v186 = vld [vmem:[#allocation7 + $0x80] sm:$0xff]
    %v187 = vld [vmem:[#allocation7 + $0x88] sm:$0xff]
    %v188 = vld [vmem:[#allocation7 + $0x90] sm:$0xff]
    %v189 = vld [vmem:[#allocation7 + $0x98] sm:$0xff]
    %v190 = vld [vmem:[#allocation7 + $0xa0] sm:$0xff]
    %v191 = vld [vmem:[#allocation7 + $0xa8] sm:$0xff]
    %v192 = vld [vmem:[#allocation7 + $0xb0] sm:$0xff]
    %v193 = vld [vmem:[#allocation7 + $0xb8] sm:$0xff]
    %v194 = vld [vmem:[#allocation7 + $0xc0] sm:$0xff]
    %v195 = vld [vmem:[#allocation7 + $0xc8] sm:$0xff]
    %v196 = vld [vmem:[#allocation7 + $0xd0] sm:$0xff]
    %v197 = vld [vmem:[#allocation7 + $0xd8] sm:$0xff]
    %v198 = vld [vmem:[#allocation7 + $0xe0] sm:$0xff]
    %v199 = vld [vmem:[#allocation7 + $0xe8] sm:$0xff]
    %v200 = vld [vmem:[#allocation7 + $0xf0] sm:$0xff]
    %v201 = vld [vmem:[#allocation7 + $0xf8] sm:$0xff]
    %v202 = vld [vmem:[#allocation8] sm:$0xf]
    %v203 = vld [vmem:[#allocation8 + $0x4] sm:$0xf]
    %v204 = vld [vmem:[#allocation8 + $0x8] sm:$0xf]
    %v205 = vld [vmem:[#allocation8 + $0xc] sm:$0xf]
    %v206 = vld [vmem:[#allocation8 + $0x10] sm:$0xf]
    %v207 = vld [vmem:[#allocation8 + $0x14] sm:$0xf]
    %v208 = vld [vmem:[#allocation8 + $0x18] sm:$0xf]
    %v209 = vld [vmem:[#allocation8 + $0x1c] sm:$0xf]
    %v210 = vld [vmem:[#allocation8 + $0x20] sm:$0xf]
    %v211 = vld [vmem:[#allocation8 + $0x24] sm:$0xf]
    %v212 = vld [vmem:[#allocation8 + $0x28] sm:$0xf]
    %v213 = vld [vmem:[#allocation8 + $0x2c] sm:$0xf]
    %v214 = vld [vmem:[#allocation8 + $0x30] sm:$0xf]
    %v215 = vld [vmem:[#allocation8 + $0x34] sm:$0xf]
    %v216 = vld [vmem:[#allocation8 + $0x38] sm:$0xf]
    %v217 = vld [vmem:[#allocation8 + $0x3c] sm:$0xf]
    %v218 = vld [vmem:[#allocation8 + $0x40] sm:$0xf]
    %v219 = vld [vmem:[#allocation8 + $0x44] sm:$0xf]
    %v220 = vld [vmem:[#allocation8 + $0x48] sm:$0xf]
    %v221 = vld [vmem:[#allocation8 + $0x4c] sm:$0xf]
    %v222 = vld [vmem:[#allocation8 + $0x50] sm:$0xf]
    %v223 = vld [vmem:[#allocation8 + $0x54] sm:$0xf]
    %v224 = vld [vmem:[#allocation8 + $0x58] sm:$0xf]
    %v225 = vld [vmem:[#allocation8 + $0x5c] sm:$0xf]
    %v226 = vld [vmem:[#allocation8 + $0x60] sm:$0xf]
    %v227 = vld [vmem:[#allocation8 + $0x64] sm:$0xf]
    %v228 = vld [vmem:[#allocation8 + $0x68] sm:$0xf]
    %v229 = vld [vmem:[#allocation8 + $0x6c] sm:$0xf]
    %v230 = vld [vmem:[#allocation8 + $0x70] sm:$0xf]
    %v231 = vld [vmem:[#allocation8 + $0x74] sm:$0xf]
    %v232 = vld [vmem:[#allocation8 + $0x78] sm:$0xf]
    %v233 = vld [vmem:[#allocation8 + $0x7c] sm:$0xf]
    %v234 = vld [vmem:[#allocation2] sm:$0xff]
    %v235 = vld [vmem:[#allocation2 + $0x8] sm:$0xff]
    %v236 = vld [vmem:[#allocation2 + $0x10] sm:$0xff]
    %v237 = vld [vmem:[#allocation2 + $0x18] sm:$0xff]
    %v238 = vld [vmem:[#allocation2 + $0x20] sm:$0xff]
    %v239 = vld [vmem:[#allocation2 + $0x28] sm:$0xff]
    %v240 = vld [vmem:[#allocation2 + $0x30] sm:$0xff]
    %v241 = vpack.c.bf16 %v234, %v234
    %v242 = vpack.c.bf16 %v235, %v235
    %v243 = vpack.c.bf16 %v236, %v236
    %v244 = vpack.c.bf16 %v237, %v237
    %v245 = vpack.c.bf16 %v238, %v238
    %v246 = vpack.c.bf16 %v239, %v239
    %v247 = vpack.c.bf16 %v240, %v240
    %v346 = vunpack.c.l.b16 %v72
    %v347 = vunpack.c.h.b16 %v72
    %v348 = vunpack.c.l.b16 %v73
    %v349 = vunpack.c.h.b16 %v73
    %v350 = vunpack.c.l.b16 %v74
    %v351 = vunpack.c.h.b16 %v74
    %v352 = vunpack.c.l.b16 %v75
    %v353 = vunpack.c.h.b16 %v75
    %v354 = vunpack.c.l.b16 %v76
    %v355 = vunpack.c.h.b16 %v76
    %v356 = vunpack.c.l.b16 %v77
    %v357 = vunpack.c.h.b16 %v77
    %v358 = vunpack.c.l.b16 %v78
    %v359 = vunpack.c.h.b16 %v78
    %v360 = vunpack.c.l.b16 %v79
    %v361 = vunpack.c.h.b16 %v79
    %v362 = vunpack.c.l.b16 %v80
    %v363 = vunpack.c.h.b16 %v80
    %v364 = vunpack.c.l.b16 %v81
    %v365 = vunpack.c.h.b16 %v81
    %v366 = vunpack.c.l.b16 %v82
    %v367 = vunpack.c.h.b16 %v82
    %v368 = vunpack.c.l.b16 %v83
    %v369 = vunpack.c.h.b16 %v83
    %v370 = vunpack.c.l.b16 %v84
    %v371 = vunpack.c.h.b16 %v84
    %v372 = vunpack.c.l.b16 %v85
    %v373 = vunpack.c.h.b16 %v85
    %v374 = vunpack.c.l.b16 %v86
    %v375 = vunpack.c.h.b16 %v86
    %v376 = vunpack.c.l.b16 %v87
    %v377 = vunpack.c.h.b16 %v87
    %v378 = vunpack.c.l.b16 %v88
    %v379 = vunpack.c.h.b16 %v88
    %v380 = vunpack.c.l.b16 %v89
    %v381 = vunpack.c.h.b16 %v89
    %v382 = vunpack.c.l.b16 %v90
    %v383 = vunpack.c.h.b16 %v90
    %v384 = vunpack.c.l.b16 %v91
    %v385 = vunpack.c.h.b16 %v91
    %v386 = vunpack.c.l.b16 %v92
    %v387 = vunpack.c.h.b16 %v92
    %v388 = vunpack.c.l.b16 %v93
    %v389 = vunpack.c.h.b16 %v93
    %v390 = vunpack.c.l.b16 %v94
    %v391 = vunpack.c.h.b16 %v94
    %v392 = vunpack.c.l.b16 %v95
    %v393 = vunpack.c.h.b16 %v95
    %v394 = vunpack.c.l.b16 %v96
    %v395 = vunpack.c.h.b16 %v96
    %v396 = vunpack.c.l.b16 %v97
    %v397 = vunpack.c.h.b16 %v97
    %v398 = vunpack.c.l.b16 %v98
    %v399 = vunpack.c.h.b16 %v98
    %v400 = vunpack.c.l.b16 %v99
    %v401 = vunpack.c.h.b16 %v99
    %v402 = vunpack.c.l.b16 %v100
    %v403 = vunpack.c.h.b16 %v100
    %v404 = vunpack.c.l.b16 %v101
    %v405 = vunpack.c.h.b16 %v101
    %v406 = vunpack.c.l.b16 %v102
    %v407 = vunpack.c.h.b16 %v102
    %v408 = vunpack.c.l.b16 %v103
    %v409 = vunpack.c.h.b16 %v103
    %v410 = vunpack.c.l.b16 %v104
    %v411 = vunpack.c.h.b16 %v104
    %v412 = vunpack.c.l.b16 %v105
    %v413 = vunpack.c.h.b16 %v105
    %v414 = vunpack.c.l.b16 %v106
    %v415 = vunpack.c.h.b16 %v106
    %v416 = vunpack.c.l.b16 %v107
    %v417 = vunpack.c.h.b16 %v107
    %v418 = vunpack.c.l.b16 %v108
    %v419 = vunpack.c.h.b16 %v108
    %v420 = vunpack.c.l.b16 %v109
    %v421 = vunpack.c.h.b16 %v109
    %v422 = vunpack.c.l.b16 %v110
    %v423 = vunpack.c.h.b16 %v110
    %v424 = vunpack.c.l.b16 %v111
    %v425 = vunpack.c.h.b16 %v111
    %v426 = vunpack.c.l.b16 %v112
    %v427 = vunpack.c.h.b16 %v112
    %v428 = vunpack.c.l.b16 %v113
    %v429 = vunpack.c.h.b16 %v113
    %v430 = vunpack.c.l.b16 %v114
    %v431 = vunpack.c.h.b16 %v114
    %v432 = vunpack.c.l.b16 %v115
    %v433 = vunpack.c.h.b16 %v115
    %v434 = vunpack.c.l.b16 %v116
    %v435 = vunpack.c.h.b16 %v116
    %v436 = vunpack.c.l.b16 %v117
    %v437 = vunpack.c.h.b16 %v117
    %v438 = vunpack.c.l.b16 %v118
    %v439 = vunpack.c.h.b16 %v118
    %v440 = vunpack.c.l.b16 %v119
    %v441 = vunpack.c.h.b16 %v119
    %v442 = vunpack.c.l.b16 %v120
    %v443 = vunpack.c.h.b16 %v120
    %v444 = vunpack.c.l.b16 %v121
    %v445 = vunpack.c.h.b16 %v121
    %v446 = vunpack.c.l.b16 %v122
    %v447 = vunpack.c.h.b16 %v122
    %v448 = vunpack.c.l.b16 %v123
    %v449 = vunpack.c.h.b16 %v123
    %v450 = vunpack.c.l.b16 %v124
    %v451 = vunpack.c.h.b16 %v124
    %v452 = vunpack.c.l.b16 %v125
    %v453 = vunpack.c.h.b16 %v125
    %v454 = vunpack.c.l.b16 %v126
    %v455 = vunpack.c.h.b16 %v126
    %v456 = vunpack.c.l.b16 %v127
    %v457 = vunpack.c.h.b16 %v127
    %v458 = vunpack.c.l.b16 %v128
    %v459 = vunpack.c.h.b16 %v128
    %v460 = vunpack.c.l.b16 %v129
    %v461 = vunpack.c.h.b16 %v129
    %v462 = vunpack.c.l.b16 %v130
    %v463 = vunpack.c.h.b16 %v130
    %v464 = vunpack.c.l.b16 %v131
    %v465 = vunpack.c.h.b16 %v131
    %v466 = vunpack.c.l.b16 %v132
    %v467 = vunpack.c.h.b16 %v132
    %v468 = vunpack.c.l.b16 %v133
    %v469 = vunpack.c.h.b16 %v133
    %v470 = vunpack.c.l.b16 %v134
    %v471 = vunpack.c.h.b16 %v134
    %v472 = vunpack.c.l.b16 %v135
    %v473 = vunpack.c.h.b16 %v135
    %v474 = vunpack.c.l.b16 %v136
    %v475 = vunpack.c.h.b16 %v136
    %v476 = vunpack.c.l.b16 %v137
    %v477 = vunpack.c.h.b16 %v137
    %v478 = vunpack.c.l.b16 %v138
    %v479 = vunpack.c.h.b16 %v138
    %v480 = vunpack.c.l.b16 %v139
    %v481 = vunpack.c.h.b16 %v139
    %v482 = vunpack.c.l.b16 %v140
    %v483 = vunpack.c.h.b16 %v140
    %v484 = vunpack.c.l.b16 %v141
    %v485 = vunpack.c.h.b16 %v141
    %v486 = vunpack.c.l.b16 %v142
    %v487 = vunpack.c.h.b16 %v142
    %v488 = vunpack.c.l.b16 %v143
    %v489 = vunpack.c.h.b16 %v143
    %v490 = vunpack.c.l.b16 %v144
    %v491 = vunpack.c.h.b16 %v144
    %v492 = vunpack.c.l.b16 %v145
    %v493 = vunpack.c.h.b16 %v145
    %v494 = vunpack.c.l.b16 %v146
    %v495 = vunpack.c.h.b16 %v146
    %v496 = vunpack.c.l.b16 %v147
    %v497 = vunpack.c.h.b16 %v147
    %v498 = vunpack.c.l.b16 %v148
    %v499 = vunpack.c.h.b16 %v148
    %v500 = vunpack.c.l.b16 %v149
    %v501 = vunpack.c.h.b16 %v149
    %v502 = vunpack.c.l.b16 %v150
    %v503 = vunpack.c.h.b16 %v150
    %v504 = vunpack.c.l.b16 %v151
    %v505 = vunpack.c.h.b16 %v151
    %v506 = vunpack.c.l.b16 %v152
    %v507 = vunpack.c.h.b16 %v152
    %v508 = vunpack.c.l.b16 %v153
    %v509 = vunpack.c.h.b16 %v153
    %v510 = vunpack.c.l.b16 %v154
    %v511 = vunpack.c.h.b16 %v154
    %v512 = vunpack.c.l.b16 %v155
    %v513 = vunpack.c.h.b16 %v155
    %v514 = vunpack.c.l.b16 %v156
    %v515 = vunpack.c.h.b16 %v156
    %v516 = vunpack.c.l.b16 %v157
    %v517 = vunpack.c.h.b16 %v157
    %v518 = vunpack.c.l.b16 %v158
    %v519 = vunpack.c.h.b16 %v158
    %v520 = vunpack.c.l.b16 %v159
    %v521 = vunpack.c.h.b16 %v159
    %v522 = vunpack.c.l.b16 %v160
    %v523 = vunpack.c.h.b16 %v160
    %v524 = vunpack.c.l.b16 %v161
    %v525 = vunpack.c.h.b16 %v161
    %v526 = vunpack.c.l.b16 %v162
    %v527 = vunpack.c.h.b16 %v162
    %v528 = vunpack.c.l.b16 %v163
    %v529 = vunpack.c.h.b16 %v163
    %v530 = vunpack.c.l.b16 %v164
    %v531 = vunpack.c.h.b16 %v164
    %v532 = vunpack.c.l.b16 %v165
    %v533 = vunpack.c.h.b16 %v165
    %v534 = vunpack.c.l.b16 %v166
    %v535 = vunpack.c.h.b16 %v166
    %v536 = vunpack.c.l.b16 %v167
    %v537 = vunpack.c.h.b16 %v167
    %v538 = vunpack.c.l.b16 %v168
    %v539 = vunpack.c.h.b16 %v168
    %v540 = vunpack.c.l.b16 %v169
    %v541 = vunpack.c.h.b16 %v169
    %v542 = vpack.c.b16 %v348, %v346
    %v543 = vpack.c.b16 %v349, %v347
    %v544 = vpack.c.b16 %v352, %v350
    %v545 = vpack.c.b16 %v353, %v351
    %v546 = vpack.c.b16 %v356, %v354
    %v547 = vpack.c.b16 %v357, %v355
    %v548 = vpack.c.b16 %v360, %v358
    %v549 = vpack.c.b16 %v361, %v359
    %v550 = vpack.c.b16 %v364, %v362
    %v551 = vpack.c.b16 %v365, %v363
    %v552 = vpack.c.b16 %v368, %v366
    %v553 = vpack.c.b16 %v369, %v367
    %v554 = vpack.c.b16 %v372, %v370
    %v555 = vpack.c.b16 %v373, %v371
    %v556 = vpack.c.b16 %v376, %v374
    %v557 = vpack.c.b16 %v377, %v375
    %v558 = vpack.c.b16 %v380, %v378
    %v559 = vpack.c.b16 %v381, %v379
    %v560 = vpack.c.b16 %v384, %v382
    %v561 = vpack.c.b16 %v385, %v383
    %v562 = vpack.c.b16 %v388, %v386
    %v563 = vpack.c.b16 %v389, %v387
    %v564 = vpack.c.b16 %v392, %v390
    %v565 = vpack.c.b16 %v393, %v391
    %v566 = vpack.c.b16 %v396, %v394
    %v567 = vpack.c.b16 %v397, %v395
    %v568 = vpack.c.b16 %v400, %v398
    %v569 = vpack.c.b16 %v401, %v399
    %v570 = vpack.c.b16 %v404, %v402
    %v571 = vpack.c.b16 %v405, %v403
    %v572 = vpack.c.b16 %v408, %v406
    %v573 = vpack.c.b16 %v409, %v407
    %v574 = vpack.c.b16 %v412, %v410
    %v575 = vpack.c.b16 %v413, %v411
    %v576 = vpack.c.b16 %v416, %v414
    %v577 = vpack.c.b16 %v417, %v415
    %v578 = vpack.c.b16 %v420, %v418
    %v579 = vpack.c.b16 %v421, %v419
    %v580 = vpack.c.b16 %v424, %v422
    %v581 = vpack.c.b16 %v425, %v423
    %v582 = vpack.c.b16 %v428, %v426
    %v583 = vpack.c.b16 %v429, %v427
    %v584 = vpack.c.b16 %v432, %v430
    %v585 = vpack.c.b16 %v433, %v431
    %v586 = vpack.c.b16 %v436, %v434
    %v587 = vpack.c.b16 %v437, %v435
    %v588 = vpack.c.b16 %v440, %v438
    %v589 = vpack.c.b16 %v441, %v439
    %v590 = vpack.c.b16 %v444, %v442
    %v591 = vpack.c.b16 %v445, %v443
    %v592 = vpack.c.b16 %v448, %v446
    %v593 = vpack.c.b16 %v449, %v447
    %v594 = vpack.c.b16 %v452, %v450
    %v595 = vpack.c.b16 %v453, %v451
    %v596 = vpack.c.b16 %v456, %v454
    %v597 = vpack.c.b16 %v457, %v455
    %v598 = vpack.c.b16 %v460, %v458
    %v599 = vpack.c.b16 %v461, %v459
    %v600 = vpack.c.b16 %v464, %v462
    %v601 = vpack.c.b16 %v465, %v463
    %v602 = vpack.c.b16 %v468, %v466
    %v603 = vpack.c.b16 %v469, %v467
    %v604 = vpack.c.b16 %v472, %v470
    %v605 = vpack.c.b16 %v473, %v471
    %v606 = vpack.c.b16 %v476, %v474
    %v607 = vpack.c.b16 %v477, %v475
    %v608 = vpack.c.b16 %v480, %v478
    %v609 = vpack.c.b16 %v481, %v479
    %v610 = vpack.c.b16 %v484, %v482
    %v611 = vpack.c.b16 %v485, %v483
    %v612 = vpack.c.b16 %v488, %v486
    %v613 = vpack.c.b16 %v489, %v487
    %v614 = vpack.c.b16 %v492, %v490
    %v615 = vpack.c.b16 %v493, %v491
    %v616 = vpack.c.b16 %v496, %v494
    %v617 = vpack.c.b16 %v497, %v495
    %v618 = vpack.c.b16 %v500, %v498
    %v619 = vpack.c.b16 %v501, %v499
    %v620 = vpack.c.b16 %v504, %v502
    %v621 = vpack.c.b16 %v505, %v503
    %v622 = vpack.c.b16 %v508, %v506
    %v623 = vpack.c.b16 %v509, %v507
    %v624 = vpack.c.b16 %v512, %v510
    %v625 = vpack.c.b16 %v513, %v511
    %v626 = vpack.c.b16 %v516, %v514
    %v627 = vpack.c.b16 %v517, %v515
    %v628 = vpack.c.b16 %v520, %v518
    %v629 = vpack.c.b16 %v521, %v519
    %v630 = vpack.c.b16 %v524, %v522
    %v631 = vpack.c.b16 %v525, %v523
    %v632 = vpack.c.b16 %v528, %v526
    %v633 = vpack.c.b16 %v529, %v527
    %v634 = vpack.c.b16 %v532, %v530
    %v635 = vpack.c.b16 %v533, %v531
    %v636 = vpack.c.b16 %v536, %v534
    %v637 = vpack.c.b16 %v537, %v535
    %v638 = vpack.c.b16 %v540, %v538
    %v639 = vpack.c.b16 %v541, %v539
    %vm738 = vcmask 130048
    %v740 = vsel %vm738, %v247, 0
    %742 = vmatprep.subr.bf16.mxu0 %v543
    %743 = vmatpush1.bf16.msra.mxu0 %v542
    %744 = vmatprep.subr.bf16.mxu0 %v545
    %745 = vmatpush1.bf16.msra.mxu0 %v544
    %746 = vmatprep.subr.bf16.mxu0 %v547
    %747 = vmatpush1.bf16.msra.mxu0 %v546
    %748 = vmatprep.subr.bf16.mxu0 %v549
    %749 = vmatpush1.bf16.msra.mxu0 %v548
    %750 = vmatprep.subr.bf16.mxu0 %v551
    %751 = vmatpush1.bf16.msra.mxu0 %v550
    %752 = vmatprep.subr.bf16.mxu0 %v553
    %753 = vmatpush1.bf16.msra.mxu0 %v552
    %754 = vmatprep.subr.bf16.mxu0 %v555
    %755 = vmatpush1.bf16.msra.mxu0 %v554
    %756 = vmatprep.subr.bf16.mxu0 %v557
    %757 = vmatpush1.bf16.msra.mxu0 %v556
    %758 = vmatprep.subr.bf16.mxu0 %v559
    %759 = vmatpush1.bf16.msra.mxu0 %v558
    %760 = vmatprep.subr.bf16.mxu0 %v561
    %761 = vmatpush1.bf16.msra.mxu0 %v560
    %762 = vmatprep.subr.bf16.mxu0 %v563
    %763 = vmatpush1.bf16.msra.mxu0 %v562
    %764 = vmatprep.subr.bf16.mxu0 %v565
    %765 = vmatpush1.bf16.msra.mxu0 %v564
    %766 = vmatprep.subr.bf16.mxu0 %v567
    %767 = vmatpush1.bf16.msra.mxu0 %v566
    %768 = vmatprep.subr.bf16.mxu0 %v569
    %769 = vmatpush1.bf16.msra.mxu0 %v568
    %770 = vmatprep.subr.bf16.mxu0 %v571
    %771 = vmatpush1.bf16.msra.mxu0 %v570
    %772 = vmatprep.subr.bf16.mxu0 %v573
    %773 = vmatpush1.bf16.msra.mxu0 %v572
    %774 = vmatprep.mubr.bf16.mxu0 %v242
    %775 = vmatmul.mubr.bf16.gmra.mrb[0].mxu0 %v241
    %v776 = vpop.f32.mrb[0].mxu0
    %v777 = vadd.f32 0.0, %v776
    %v778 = vpop.f32.mrb[0].mxu0
    %v779 = vadd.f32 0.0, %v778
    %v780 = vpop.f32.mrb[0].mxu0
    %v781 = vpop.f32.mrb[0].mxu0
    %782 = vdwg.mxu0
    %783 = vmatprep.subr.bf16.mxu0 %v575
    %784 = vmatpush1.bf16.msra.mxu0 %v574
    %785 = vmatprep.subr.bf16.mxu0 %v577
    %786 = vmatpush1.bf16.msra.mxu0 %v576
    %787 = vmatprep.subr.bf16.mxu0 %v579
    %788 = vmatpush1.bf16.msra.mxu0 %v578
    %789 = vmatprep.subr.bf16.mxu0 %v581
    %790 = vmatpush1.bf16.msra.mxu0 %v580
    %791 = vmatprep.subr.bf16.mxu0 %v583
    %792 = vmatpush1.bf16.msra.mxu0 %v582
    %793 = vmatprep.subr.bf16.mxu0 %v585
    %794 = vmatpush1.bf16.msra.mxu0 %v584
    %795 = vmatprep.subr.bf16.mxu0 %v587
    %796 = vmatpush1.bf16.msra.mxu0 %v586
    %797 = vmatprep.subr.bf16.mxu0 %v589
    %798 = vmatpush1.bf16.msra.mxu0 %v588
    %799 = vmatprep.subr.bf16.mxu0 %v591
    %800 = vmatpush1.bf16.msra.mxu0 %v590
    %801 = vmatprep.subr.bf16.mxu0 %v593
    %802 = vmatpush1.bf16.msra.mxu0 %v592
    %803 = vmatprep.subr.bf16.mxu0 %v595
    %804 = vmatpush1.bf16.msra.mxu0 %v594
    %805 = vmatprep.subr.bf16.mxu0 %v597
    %806 = vmatpush1.bf16.msra.mxu0 %v596
    %807 = vmatprep.subr.bf16.mxu0 %v599
    %808 = vmatpush1.bf16.msra.mxu0 %v598
    %809 = vmatprep.subr.bf16.mxu0 %v601
    %810 = vmatpush1.bf16.msra.mxu0 %v600
    %811 = vmatprep.subr.bf16.mxu0 %v603
    %812 = vmatpush1.bf16.msra.mxu0 %v602
    %813 = vmatprep.subr.bf16.mxu0 %v605
    %814 = vmatpush1.bf16.msra.mxu0 %v604
    %815 = vmatprep.mubr.bf16.mxu0 %v244
    %816 = vmatmul.mubr.bf16.gmra.mrb[0].mxu0 %v243
    %v817 = vpop.f32.mrb[0].mxu0
    %v818 = vadd.f32 %v777, %v817
    %v819 = vpop.f32.mrb[0].mxu0
    %v820 = vadd.f32 %v779, %v819
    %v821 = vpop.f32.mrb[0].mxu0
    %v822 = vpop.f32.mrb[0].mxu0
    %823 = vdwg.mxu0
    %824 = vmatprep.subr.bf16.mxu0 %v607
    %825 = vmatpush1.bf16.msra.mxu0 %v606
    %826 = vmatprep.subr.bf16.mxu0 %v609
    %827 = vmatpush1.bf16.msra.mxu0 %v608
    %828 = vmatprep.subr.bf16.mxu0 %v611
    %829 = vmatpush1.bf16.msra.mxu0 %v610
    %830 = vmatprep.subr.bf16.mxu0 %v613
    %831 = vmatpush1.bf16.msra.mxu0 %v612
    %832 = vmatprep.subr.bf16.mxu0 %v615
    %833 = vmatpush1.bf16.msra.mxu0 %v614
    %834 = vmatprep.subr.bf16.mxu0 %v617
    %835 = vmatpush1.bf16.msra.mxu0 %v616
    %836 = vmatprep.subr.bf16.mxu0 %v619
    %837 = vmatpush1.bf16.msra.mxu0 %v618
    %838 = vmatprep.subr.bf16.mxu0 %v621
    %839 = vmatpush1.bf16.msra.mxu0 %v620
    %840 = vmatprep.subr.bf16.mxu0 %v623
    %841 = vmatpush1.bf16.msra.mxu0 %v622
    %842 = vmatprep.subr.bf16.mxu0 %v625
    %843 = vmatpush1.bf16.msra.mxu0 %v624
    %844 = vmatprep.subr.bf16.mxu0 %v627
    %845 = vmatpush1.bf16.msra.mxu0 %v626
    %846 = vmatprep.subr.bf16.mxu0 %v629
    %847 = vmatpush1.bf16.msra.mxu0 %v628
    %848 = vmatprep.subr.bf16.mxu0 %v631
    %849 = vmatpush1.bf16.msra.mxu0 %v630
    %850 = vmatprep.subr.bf16.mxu0 %v633
    %851 = vmatpush1.bf16.msra.mxu0 %v632
    %852 = vmatprep.subr.bf16.mxu0 %v635
    %853 = vmatpush1.bf16.msra.mxu0 %v634
    %854 = vmatprep.subr.bf16.mxu0 %v637
    %855 = vmatpush1.bf16.msra.mxu0 %v636
    %856 = vmatprep.mubr.bf16.mxu0 %v246
    %857 = vmatmul.mubr.bf16.gmra.mrb[0].mxu0 %v245
    %v858 = vpop.f32.mrb[0].mxu0
    %v859 = vadd.f32 %v818, %v858
    %v860 = vpop.f32.mrb[0].mxu0
    %v861 = vadd.f32 %v820, %v860
    %v862 = vpop.f32.mrb[0].mxu0
    %v863 = vpop.f32.mrb[0].mxu0
    %864 = vdwg.mxu0
    %865 = vmatprep.subr.bf16.mxu0 %v639
    %866 = vmatpush1.bf16.msra.mxu0 %v638
    %867 = vmatprep.subr.bf16.mxu0 0
    %868 = vmatpush1.bf16.msra.mxu0 0
    %869 = vmatprep.subr.bf16.mxu0 0
    %870 = vmatpush1.bf16.msra.mxu0 0
    %871 = vmatprep.subr.bf16.mxu0 0
    %872 = vmatpush1.bf16.msra.mxu0 0
    %873 = vmatprep.subr.bf16.mxu0 0
    %874 = vmatpush1.bf16.msra.mxu0 0
    %875 = vmatprep.subr.bf16.mxu0 0
    %876 = vmatpush1.bf16.msra.mxu0 0
    %877 = vmatprep.subr.bf16.mxu0 0
    %878 = vmatpush1.bf16.msra.mxu0 0
    %879 = vmatprep.subr.bf16.mxu0 0
    %880 = vmatpush1.bf16.msra.mxu0 0
    %881 = vmatprep.subr.bf16.mxu0 0
    %882 = vmatpush1.bf16.msra.mxu0 0
    %883 = vmatprep.subr.bf16.mxu0 0
    %884 = vmatpush1.bf16.msra.mxu0 0
    %885 = vmatprep.subr.bf16.mxu0 0
    %886 = vmatpush1.bf16.msra.mxu0 0
    %887 = vmatprep.subr.bf16.mxu0 0
    %888 = vmatpush1.bf16.msra.mxu0 0
    %889 = vmatprep.subr.bf16.mxu0 0
    %890 = vmatpush1.bf16.msra.mxu0 0
    %891 = vmatprep.subr.bf16.mxu0 0
    %892 = vmatpush1.bf16.msra.mxu0 0
    %893 = vmatprep.subr.bf16.mxu0 0
    %894 = vmatpush1.bf16.msra.mxu0 0
    %895 = vmatprep.subr.bf16.mxu0 0
    %896 = vmatpush1.bf16.msra.mxu0 0
    %897 = vmatprep.mubr.bf16.mxu0 0
    %898 = vmatmul.mubr.bf16.gmra.mrb[0].mxu0 %v740
    %v899 = vpop.f32.mrb[0].mxu0
    %v900 = vadd.f32 %v859, %v899
    %v901 = vpop.f32.mrb[0].mxu0
    %v902 = vadd.f32 %v861, %v901
    %v903 = vpop.f32.mrb[0].mxu0
    %v904 = vpop.f32.mrb[0].mxu0
    %905 = vdwg.mxu0
    %v906 = vpack.c.bf16 %v900, %v900
    %v907 = vpack.c.bf16 %v902, %v902
    %v940 = vunpack.c.l.b16 %v170
    %v941 = vunpack.c.h.b16 %v170
    %v942 = vunpack.c.l.b16 %v171
    %v943 = vunpack.c.h.b16 %v171
    %v944 = vunpack.c.l.b16 %v172
    %v945 = vunpack.c.h.b16 %v172
    %v946 = vunpack.c.l.b16 %v173
    %v947 = vunpack.c.h.b16 %v173
    %v948 = vunpack.c.l.b16 %v174
    %v949 = vunpack.c.h.b16 %v174
    %v950 = vunpack.c.l.b16 %v175
    %v951 = vunpack.c.h.b16 %v175
    %v952 = vunpack.c.l.b16 %v176
    %v953 = vunpack.c.h.b16 %v176
    %v954 = vunpack.c.l.b16 %v177
    %v955 = vunpack.c.h.b16 %v177
    %v956 = vunpack.c.l.b16 %v178
    %v957 = vunpack.c.h.b16 %v178
    %v958 = vunpack.c.l.b16 %v179
    %v959 = vunpack.c.h.b16 %v179
    %v960 = vunpack.c.l.b16 %v180
    %v961 = vunpack.c.h.b16 %v180
    %v962 = vunpack.c.l.b16 %v181
    %v963 = vunpack.c.h.b16 %v181
    %v964 = vunpack.c.l.b16 %v182
    %v965 = vunpack.c.h.b16 %v182
    %v966 = vunpack.c.l.b16 %v183
    %v967 = vunpack.c.h.b16 %v183
    %v968 = vunpack.c.l.b16 %v184
    %v969 = vunpack.c.h.b16 %v184
    %v970 = vunpack.c.l.b16 %v185
    %v971 = vunpack.c.h.b16 %v185
    %v972 = vunpack.c.l.b16 %v186
    %v973 = vunpack.c.h.b16 %v186
    %v974 = vunpack.c.l.b16 %v187
    %v975 = vunpack.c.h.b16 %v187
    %v976 = vunpack.c.l.b16 %v188
    %v977 = vunpack.c.h.b16 %v188
    %v978 = vunpack.c.l.b16 %v189
    %v979 = vunpack.c.h.b16 %v189
    %v980 = vunpack.c.l.b16 %v190
    %v981 = vunpack.c.h.b16 %v190
    %v982 = vunpack.c.l.b16 %v191
    %v983 = vunpack.c.h.b16 %v191
    %v984 = vunpack.c.l.b16 %v192
    %v985 = vunpack.c.h.b16 %v192
    %v986 = vunpack.c.l.b16 %v193
    %v987 = vunpack.c.h.b16 %v193
    %v988 = vunpack.c.l.b16 %v194
    %v989 = vunpack.c.h.b16 %v194
    %v990 = vunpack.c.l.b16 %v195
    %v991 = vunpack.c.h.b16 %v195
    %v992 = vunpack.c.l.b16 %v196
    %v993 = vunpack.c.h.b16 %v196
    %v994 = vunpack.c.l.b16 %v197
    %v995 = vunpack.c.h.b16 %v197
    %v996 = vunpack.c.l.b16 %v198
    %v997 = vunpack.c.h.b16 %v198
    %v998 = vunpack.c.l.b16 %v199
    %v999 = vunpack.c.h.b16 %v199
    %v1000 = vunpack.c.l.b16 %v200
    %v1001 = vunpack.c.h.b16 %v200
    %v1002 = vunpack.c.l.b16 %v201
    %v1003 = vunpack.c.h.b16 %v201
    %v1004 = vpack.c.b16 %v942, %v940
    %v1005 = vpack.c.b16 %v943, %v941
    %v1006 = vpack.c.b16 %v946, %v944
    %v1007 = vpack.c.b16 %v947, %v945
    %v1008 = vpack.c.b16 %v950, %v948
    %v1009 = vpack.c.b16 %v951, %v949
    %v1010 = vpack.c.b16 %v954, %v952
    %v1011 = vpack.c.b16 %v955, %v953
    %v1012 = vpack.c.b16 %v958, %v956
    %v1013 = vpack.c.b16 %v959, %v957
    %v1014 = vpack.c.b16 %v962, %v960
    %v1015 = vpack.c.b16 %v963, %v961
    %v1016 = vpack.c.b16 %v966, %v964
    %v1017 = vpack.c.b16 %v967, %v965
    %v1018 = vpack.c.b16 %v970, %v968
    %v1019 = vpack.c.b16 %v971, %v969
    %v1020 = vpack.c.b16 %v974, %v972
    %v1021 = vpack.c.b16 %v975, %v973
    %v1022 = vpack.c.b16 %v978, %v976
    %v1023 = vpack.c.b16 %v979, %v977
    %v1024 = vpack.c.b16 %v982, %v980
    %v1025 = vpack.c.b16 %v983, %v981
    %v1026 = vpack.c.b16 %v986, %v984
    %v1027 = vpack.c.b16 %v987, %v985
    %v1028 = vpack.c.b16 %v990, %v988
    %v1029 = vpack.c.b16 %v991, %v989
    %v1030 = vpack.c.b16 %v994, %v992
    %v1031 = vpack.c.b16 %v995, %v993
    %v1032 = vpack.c.b16 %v998, %v996
    %v1033 = vpack.c.b16 %v999, %v997
    %v1034 = vpack.c.b16 %v1002, %v1000
    %v1035 = vpack.c.b16 %v1003, %v1001
    %1068 = vmatprep.subr.bf16.mxu0 %v1005
    %1069 = vmatpush1.bf16.msra.mxu0 %v1004
    %1070 = vmatprep.subr.bf16.mxu0 %v1007
    %1071 = vmatpush1.bf16.msra.mxu0 %v1006
    %1072 = vmatprep.subr.bf16.mxu0 %v1009
    %1073 = vmatpush1.bf16.msra.mxu0 %v1008
    %1074 = vmatprep.subr.bf16.mxu0 %v1011
    %1075 = vmatpush1.bf16.msra.mxu0 %v1010
    %1076 = vmatprep.subr.bf16.mxu0 %v1013
    %1077 = vmatpush1.bf16.msra.mxu0 %v1012
    %1078 = vmatprep.subr.bf16.mxu0 %v1015
    %1079 = vmatpush1.bf16.msra.mxu0 %v1014
    %1080 = vmatprep.subr.bf16.mxu0 %v1017
    %1081 = vmatpush1.bf16.msra.mxu0 %v1016
    %1082 = vmatprep.subr.bf16.mxu0 %v1019
    %1083 = vmatpush1.bf16.msra.mxu0 %v1018
    %1084 = vmatprep.subr.bf16.mxu0 %v1021
    %1085 = vmatpush1.bf16.msra.mxu0 %v1020
    %1086 = vmatprep.subr.bf16.mxu0 %v1023
    %1087 = vmatpush1.bf16.msra.mxu0 %v1022
    %1088 = vmatprep.subr.bf16.mxu0 %v1025
    %1089 = vmatpush1.bf16.msra.mxu0 %v1024
    %1090 = vmatprep.subr.bf16.mxu0 %v1027
    %1091 = vmatpush1.bf16.msra.mxu0 %v1026
    %1092 = vmatprep.subr.bf16.mxu0 %v1029
    %1093 = vmatpush1.bf16.msra.mxu0 %v1028
    %1094 = vmatprep.subr.bf16.mxu0 %v1031
    %1095 = vmatpush1.bf16.msra.mxu0 %v1030
    %1096 = vmatprep.subr.bf16.mxu0 %v1033
    %1097 = vmatpush1.bf16.msra.mxu0 %v1032
    %1098 = vmatprep.subr.bf16.mxu0 %v1035
    %1099 = vmatpush1.bf16.msra.mxu0 %v1034
    %1100 = vmatprep.mubr.bf16.mxu0 %v907
    %1101 = vmatmul.mubr.bf16.gmra.mrb[0].mxu0 %v906
    %v1102 = vpop.f32.mrb[0].mxu0
    %v1103 = vadd.f32 0.0, %v1102
    %v1104 = vpop.f32.mrb[0].mxu0
    %v1105 = vadd.f32 0.0, %v1104
    %v1106 = vpop.f32.mrb[0].mxu0
    %v1107 = vpop.f32.mrb[0].mxu0
    %1108 = vdwg.mxu0
    %v1109 = vmul.f32 %v1103, %v900
    %v1110 = vmul.f32 %v1105, %v902
    %v1111 = vadd.f32 %v1109, %v900
    %v1112 = vadd.f32 %v1110, %v902
    %v1113 = vpack.c.bf16 %v1111, %v1111
    %v1114 = vpack.c.bf16 %v1112, %v1112
    %1115 = vmatprep.subr.bf16.mxu0 %v1005
    %1116 = vmatpush1.bf16.msra.mxu0 %v1004
    %1117 = vmatprep.subr.bf16.mxu0 %v1007
    %1118 = vmatpush1.bf16.msra.mxu0 %v1006
    %1119 = vmatprep.subr.bf16.mxu0 %v1009
    %1120 = vmatpush1.bf16.msra.mxu0 %v1008
    %1121 = vmatprep.subr.bf16.mxu0 %v1011
    %1122 = vmatpush1.bf16.msra.mxu0 %v1010
    %1123 = vmatprep.subr.bf16.mxu0 %v1013
    %1124 = vmatpush1.bf16.msra.mxu0 %v1012
    %1125 = vmatprep.subr.bf16.mxu0 %v1015
    %1126 = vmatpush1.bf16.msra.mxu0 %v1014
    %1127 = vmatprep.subr.bf16.mxu0 %v1017
    %1128 = vmatpush1.bf16.msra.mxu0 %v1016
    %1129 = vmatprep.subr.bf16.mxu0 %v1019
    %1130 = vmatpush1.bf16.msra.mxu0 %v1018
    %1131 = vmatprep.subr.bf16.mxu0 %v1021
    %1132 = vmatpush1.bf16.msra.mxu0 %v1020
    %1133 = vmatprep.subr.bf16.mxu0 %v1023
    %1134 = vmatpush1.bf16.msra.mxu0 %v1022
    %1135 = vmatprep.subr.bf16.mxu0 %v1025
    %1136 = vmatpush1.bf16.msra.mxu0 %v1024
    %1137 = vmatprep.subr.bf16.mxu0 %v1027
    %1138 = vmatpush1.bf16.msra.mxu0 %v1026
    %1139 = vmatprep.subr.bf16.mxu0 %v1029
    %1140 = vmatpush1.bf16.msra.mxu0 %v1028
    %1141 = vmatprep.subr.bf16.mxu0 %v1031
    %1142 = vmatpush1.bf16.msra.mxu0 %v1030
    %1143 = vmatprep.subr.bf16.mxu0 %v1033
    %1144 = vmatpush1.bf16.msra.mxu0 %v1032
    %1145 = vmatprep.subr.bf16.mxu0 %v1035
    %1146 = vmatpush1.bf16.msra.mxu0 %v1034
    %1147 = vmatprep.mubr.bf16.mxu0 %v1114
    %1148 = vmatmul.mubr.bf16.gmra.mrb[0].mxu0 %v1113
    %v1149 = vpop.f32.mrb[0].mxu0
    %v1150 = vadd.f32 0.0, %v1149
    %v1151 = vpop.f32.mrb[0].mxu0
    %v1152 = vadd.f32 0.0, %v1151
    %v1153 = vpop.f32.mrb[0].mxu0
    %v1154 = vpop.f32.mrb[0].mxu0
    %1155 = vdwg.mxu0
    %v1156 = vmul.f32 %v1150, %v900
    %v1157 = vmul.f32 %v1152, %v902
    %v1158 = vadd.f32 %v1156, %v900
    %v1159 = vadd.f32 %v1157, %v902
    %v1160 = vpack.c.bf16 %v1158, %v1158
    %v1161 = vpack.c.bf16 %v1159, %v1159
    %1162 = vmatprep.subr.bf16.mxu0 %v1005
    %1163 = vmatpush1.bf16.msra.mxu0 %v1004
    %1164 = vmatprep.subr.bf16.mxu0 %v1007
    %1165 = vmatpush1.bf16.msra.mxu0 %v1006
    %1166 = vmatprep.subr.bf16.mxu0 %v1009
    %1167 = vmatpush1.bf16.msra.mxu0 %v1008
    %1168 = vmatprep.subr.bf16.mxu0 %v1011
    %1169 = vmatpush1.bf16.msra.mxu0 %v1010
    %1170 = vmatprep.subr.bf16.mxu0 %v1013
    %1171 = vmatpush1.bf16.msra.mxu0 %v1012
    %1172 = vmatprep.subr.bf16.mxu0 %v1015
    %1173 = vmatpush1.bf16.msra.mxu0 %v1014
    %1174 = vmatprep.subr.bf16.mxu0 %v1017
    %1175 = vmatpush1.bf16.msra.mxu0 %v1016
    %1176 = vmatprep.subr.bf16.mxu0 %v1019
    %1177 = vmatpush1.bf16.msra.mxu0 %v1018
    %1178 = vmatprep.subr.bf16.mxu0 %v1021
    %1179 = vmatpush1.bf16.msra.mxu0 %v1020
    %1180 = vmatprep.subr.bf16.mxu0 %v1023
    %1181 = vmatpush1.bf16.msra.mxu0 %v1022
    %1182 = vmatprep.subr.bf16.mxu0 %v1025
    %1183 = vmatpush1.bf16.msra.mxu0 %v1024
    %1184 = vmatprep.subr.bf16.mxu0 %v1027
    %1185 = vmatpush1.bf16.msra.mxu0 %v1026
    %1186 = vmatprep.subr.bf16.mxu0 %v1029
    %1187 = vmatpush1.bf16.msra.mxu0 %v1028
    %1188 = vmatprep.subr.bf16.mxu0 %v1031
    %1189 = vmatpush1.bf16.msra.mxu0 %v1030
    %1190 = vmatprep.subr.bf16.mxu0 %v1033
    %1191 = vmatpush1.bf16.msra.mxu0 %v1032
    %1192 = vmatprep.subr.bf16.mxu0 %v1035
    %1193 = vmatpush1.bf16.msra.mxu0 %v1034
    %1194 = vmatprep.mubr.bf16.mxu0 %v1161
    %1195 = vmatmul.mubr.bf16.gmra.mrb[0].mxu0 %v1160
    %v1196 = vpop.f32.mrb[0].mxu0
    %v1197 = vadd.f32 0.0, %v1196
    %v1198 = vpop.f32.mrb[0].mxu0
    %v1199 = vadd.f32 0.0, %v1198
    %v1200 = vpop.f32.mrb[0].mxu0
    %v1201 = vpop.f32.mrb[0].mxu0
    %1202 = vdwg.mxu0
    %v1203 = vmul.f32 %v1197, %v900
    %v1204 = vmul.f32 %v1199, %v902
    %v1205 = vadd.f32 %v1203, %v900
    %v1206 = vadd.f32 %v1204, %v902
    %v1207 = vpack.c.bf16 %v1205, %v1205
    %v1208 = vpack.c.bf16 %v1206, %v1206
    %1209 = vmatprep.subr.bf16.mxu0 %v1005
    %1210 = vmatpush1.bf16.msra.mxu0 %v1004
    %1211 = vmatprep.subr.bf16.mxu0 %v1007
    %1212 = vmatpush1.bf16.msra.mxu0 %v1006
    %1213 = vmatprep.subr.bf16.mxu0 %v1009
    %1214 = vmatpush1.bf16.msra.mxu0 %v1008
    %1215 = vmatprep.subr.bf16.mxu0 %v1011
    %1216 = vmatpush1.bf16.msra.mxu0 %v1010
    %1217 = vmatprep.subr.bf16.mxu0 %v1013
    %1218 = vmatpush1.bf16.msra.mxu0 %v1012
    %1219 = vmatprep.subr.bf16.mxu0 %v1015
    %1220 = vmatpush1.bf16.msra.mxu0 %v1014
    %1221 = vmatprep.subr.bf16.mxu0 %v1017
    %1222 = vmatpush1.bf16.msra.mxu0 %v1016
    %1223 = vmatprep.subr.bf16.mxu0 %v1019
    %1224 = vmatpush1.bf16.msra.mxu0 %v1018
    %1225 = vmatprep.subr.bf16.mxu0 %v1021
    %1226 = vmatpush1.bf16.msra.mxu0 %v1020
    %1227 = vmatprep.subr.bf16.mxu0 %v1023
    %1228 = vmatpush1.bf16.msra.mxu0 %v1022
    %1229 = vmatprep.subr.bf16.mxu0 %v1025
    %1230 = vmatpush1.bf16.msra.mxu0 %v1024
    %1231 = vmatprep.subr.bf16.mxu0 %v1027
    %1232 = vmatpush1.bf16.msra.mxu0 %v1026
    %1233 = vmatprep.subr.bf16.mxu0 %v1029
    %1234 = vmatpush1.bf16.msra.mxu0 %v1028
    %1235 = vmatprep.subr.bf16.mxu0 %v1031
    %1236 = vmatpush1.bf16.msra.mxu0 %v1030
    %1237 = vmatprep.subr.bf16.mxu0 %v1033
    %1238 = vmatpush1.bf16.msra.mxu0 %v1032
    %1239 = vmatprep.subr.bf16.mxu0 %v1035
    %1240 = vmatpush1.bf16.msra.mxu0 %v1034
    %1241 = vmatprep.mubr.bf16.mxu0 %v1208
    %1242 = vmatmul.mubr.bf16.gmra.mrb[0].mxu0 %v1207
    %v1243 = vpop.f32.mrb[0].mxu0
    %v1244 = vadd.f32 0.0, %v1243
    %v1245 = vpop.f32.mrb[0].mxu0
    %v1246 = vadd.f32 0.0, %v1245
    %v1247 = vpop.f32.mrb[0].mxu0
    %v1248 = vpop.f32.mrb[0].mxu0
    %1249 = vdwg.mxu0
    %v1250 = vmul.f32 %v1244, %v900
    %v1251 = vmul.f32 %v1246, %v902
    %v1252 = vadd.f32 %v1250, %v900
    %v1253 = vadd.f32 %v1251, %v902
    %v1254 = vpack.c.bf16 %v1252, %v1252
    %v1255 = vpack.c.bf16 %v1253, %v1253
    %v1288 = vunpack.c.l.b16 %v202
    %v1289 = vunpack.c.l.b16 %v203
    %v1290 = vunpack.c.l.b16 %v204
    %v1291 = vunpack.c.l.b16 %v205
    %v1292 = vunpack.c.l.b16 %v206
    %v1293 = vunpack.c.l.b16 %v207
    %v1294 = vunpack.c.l.b16 %v208
    %v1295 = vunpack.c.l.b16 %v209
    %v1296 = vunpack.c.l.b16 %v210
    %v1297 = vunpack.c.l.b16 %v211
    %v1298 = vunpack.c.l.b16 %v212
    %v1299 = vunpack.c.l.b16 %v213
    %v1300 = vunpack.c.l.b16 %v214
    %v1301 = vunpack.c.l.b16 %v215
    %v1302 = vunpack.c.l.b16 %v216
    %v1303 = vunpack.c.l.b16 %v217
    %v1304 = vunpack.c.l.b16 %v218
    %v1305 = vunpack.c.l.b16 %v219
    %v1306 = vunpack.c.l.b16 %v220
    %v1307 = vunpack.c.l.b16 %v221
    %v1308 = vunpack.c.l.b16 %v222
    %v1309 = vunpack.c.l.b16 %v223
    %v1310 = vunpack.c.l.b16 %v224
    %v1311 = vunpack.c.l.b16 %v225
    %v1312 = vunpack.c.l.b16 %v226
    %v1313 = vunpack.c.l.b16 %v227
    %v1314 = vunpack.c.l.b16 %v228
    %v1315 = vunpack.c.l.b16 %v229
    %v1316 = vunpack.c.l.b16 %v230
    %v1317 = vunpack.c.l.b16 %v231
    %v1318 = vunpack.c.l.b16 %v232
    %v1319 = vunpack.c.l.b16 %v233
    %v1320 = vpack.c.b16 %v1289, %v1288
    %v1321 = vpack.c.b16 %v1291, %v1290
    %v1322 = vpack.c.b16 %v1293, %v1292
    %v1323 = vpack.c.b16 %v1295, %v1294
    %v1324 = vpack.c.b16 %v1297, %v1296
    %v1325 = vpack.c.b16 %v1299, %v1298
    %v1326 = vpack.c.b16 %v1301, %v1300
    %v1327 = vpack.c.b16 %v1303, %v1302
    %v1328 = vpack.c.b16 %v1305, %v1304
    %v1329 = vpack.c.b16 %v1307, %v1306
    %v1330 = vpack.c.b16 %v1309, %v1308
    %v1331 = vpack.c.b16 %v1311, %v1310
    %v1332 = vpack.c.b16 %v1313, %v1312
    %v1333 = vpack.c.b16 %v1315, %v1314
    %v1334 = vpack.c.b16 %v1317, %v1316
    %v1335 = vpack.c.b16 %v1319, %v1318
    %1352 = vmatprep.subr.bf16.mxu0 0
    %1353 = vmatpush1.bf16.msra.mxu0 %v1320
    %1354 = vmatprep.subr.bf16.mxu0 0
    %1355 = vmatpush1.bf16.msra.mxu0 %v1321
    %1356 = vmatprep.subr.bf16.mxu0 0
    %1357 = vmatpush1.bf16.msra.mxu0 %v1322
    %1358 = vmatprep.subr.bf16.mxu0 0
    %1359 = vmatpush1.bf16.msra.mxu0 %v1323
    %1360 = vmatprep.subr.bf16.mxu0 0
    %1361 = vmatpush1.bf16.msra.mxu0 %v1324
    %1362 = vmatprep.subr.bf16.mxu0 0
    %1363 = vmatpush1.bf16.msra.mxu0 %v1325
    %1364 = vmatprep.subr.bf16.mxu0 0
    %1365 = vmatpush1.bf16.msra.mxu0 %v1326
    %1366 = vmatprep.subr.bf16.mxu0 0
    %1367 = vmatpush1.bf16.msra.mxu0 %v1327
    %1368 = vmatprep.subr.bf16.mxu0 0
    %1369 = vmatpush1.bf16.msra.mxu0 %v1328
    %1370 = vmatprep.subr.bf16.mxu0 0
    %1371 = vmatpush1.bf16.msra.mxu0 %v1329
    %1372 = vmatprep.subr.bf16.mxu0 0
    %1373 = vmatpush1.bf16.msra.mxu0 %v1330
    %1374 = vmatprep.subr.bf16.mxu0 0
    %1375 = vmatpush1.bf16.msra.mxu0 %v1331
    %1376 = vmatprep.subr.bf16.mxu0 0
    %1377 = vmatpush1.bf16.msra.mxu0 %v1332
    %1378 = vmatprep.subr.bf16.mxu0 0
    %1379 = vmatpush1.bf16.msra.mxu0 %v1333
    %1380 = vmatprep.subr.bf16.mxu0 0
    %1381 = vmatpush1.bf16.msra.mxu0 %v1334
    %1382 = vmatprep.subr.bf16.mxu0 0
    %1383 = vmatpush1.bf16.msra.mxu0 %v1335
    %1384 = vmatprep.mubr.bf16.mxu0 %v1255
    %1385 = vmatmul.mubr.bf16.gmra.mrb[0].mxu0 %v1254
    %v1386 = vpop.f32.mrb[0].mxu0
    %v1387 = vadd.f32 0.0, %v1386
    %v1388 = vpop.f32.mrb[0].mxu0
    %v1389 = vpop.f32.mrb[0].mxu0
    %v1390 = vpop.f32.mrb[0].mxu0
    %1391 = vdwg.mxu0
    %v1392 = vpack.c.bf16 %v1387, %v1387
    %1393 = vst [vmem:[#allocation10] sm:$0xf] %v1392
    // Predicated region
    $region34: #{densedd_forward.1} parent=1 // pred_check
      _
    $region35: #{densedd_forward.1} parent=1 // pred_check_branch
      %1395 = sbr.rel (0) target = $region37
    $region36: #{densedd_forward.1} parent=1 // pred_region
      %s1397 = ssub.s32 64, 64
      %1398 = vsyncadd [#allocation4], %s1397
      %s1400 = sshll.u32 [#allocation10], 4
      %s1401 = int_to_ptr.vmem [resolvable:$true] %s1400
      %1403 = dma.vmem_to_hbm [thread:$0]  %s1401, 64, %s4, [#allocation4]
    $region37: #{densedd_forward.1} parent=1 // pred_fallthru
      _
    // Predicated region
    $region38: #{densedd_forward.1} parent=1 // pred_check
      _
    $region39: #{densedd_forward.1} parent=1 // pred_check_branch
      %1405 = sbr.rel (0) target = $region41
    $region40: #{densedd_forward.1} parent=1 // pred_region
      %1406 = dma.done [#allocation4], 64
    $region41: #{densedd_forward.1} parent=1 // pred_fallthru
      _
    %1407 = vsyncpa [#allocation3], 1
    %1408 = vsyncpa [#allocation6], 1
    %1409 = vsyncpa [#allocation9], 1
    %1410 = vsyncpa [#allocation4], 1

</llo_original>
